<compile_context>
chip_gen: v5e
topology: v5e:2x2
jax: 0.10.0
libtpu: 0.0.40
codegen_flags: <defaults>
</compile_context>

<pallas_src>
import functools

import jax
import jax.numpy as jnp
from jax.experimental import pallas as pl
from jax.experimental.pallas import tpu as pltpu


def _round_up(x, m):
    return ((x + m - 1) // m) * m


def _choose_tiles(n):
    """Returns (n_pad, tm, tk): padded node count, row tile, reduction tile."""
    n_pad = _round_up(n, 128)
    tk = 128
    for cand in (2048, 1024, 512, 256):          # big adj tiles amortize step overhead
        np2 = _round_up(n_pad, cand)
        if (np2 - n_pad) * 16 <= np2:            # accept <= ~6% padded-row waste
            tk, n_pad = cand, np2
            break
    tm = 128
    for min_blocks in (4, 2, 1):                 # v7x megacore: prefer >=4 row blocks
        cands = [t for t in (512, 256, 128)
                 if n_pad % t == 0 and n_pad // t >= min_blocks]
        if cands:
            tm = cands[0]
            break
    return n_pad, tm, tk


def _pad_rows(a, n_pad):
    pad = n_pad - a.shape[0]
    return a if pad == 0 else jnp.pad(a, ((0, pad),) + ((0, 0),) * (a.ndim - 1))


def _pad_2d(a, n_pad):
    pr, pc = n_pad - a.shape[0], n_pad - a.shape[1]
    return a if (pr == 0 and pc == 0) else jnp.pad(a, ((0, pr), (0, pc)))


def _split_hi_lo(x_f32):
    """x ~= hi + lo with both halves in bf16 (keeps ~16 mantissa bits)."""
    hi = x_f32.astype(jnp.bfloat16)
    lo = (x_f32 - hi.astype(jnp.float32)).astype(jnp.bfloat16)
    return hi, lo


def prepare_adjacency(adj):
    """Pad the dense 0/1 adjacency to the tile-aligned size and cast to int8.

    Call this ONCE per graph and reuse the result across mixhop_layer calls
    (training / repeated inference): the adjacency is the dominant HBM stream
    and the pad + cast would otherwise re-run as a full N^2 pass every call.
    NOTE: this layer assumes an unweighted (0/1) adjacency, as the DGL module's
    copy_u/sum message passing does; non-{0,1} values would be truncated here.
    """
    n_pad, _, _ = _choose_tiles(adj.shape[0])
    return _pad_2d(adj.astype(jnp.int8), n_pad)


def _compiler_params(vmem_bytes):
    # Explicit scoped-VMEM limit (v5e default is only ~16 MiB); cap well below
    # v7x's 64 MiB physical VMEM.
    limit = int(min(max(int(vmem_bytes * 1.5) + (4 << 20), 32 << 20), 48 << 20))
    return pltpu.CompilerParams(
        dimension_semantics=("parallel", "arbitrary"),
        vmem_limit_bytes=limit)


# ---------------------------------------------------------------------------
# Kernels
# ---------------------------------------------------------------------------

def _mixhop_fused_kernel(prev_ref, xhi_ref, xlo_ref, norm_ref, adj_ref, w_ref,
                         out_ref, acc_ref, *, tk, num_hops, out_dim,
                         x_resident, split_cols):
    """Last propagation hop (reduction over k tiles) + all hop projections."""
    kk = pl.program_id(1)

    @pl.when(kk == 0)
    def _init():
        acc_ref[...] = jnp.zeros_like(acc_ref)

    # acc[i_block] += A[i_block, k_block] @ (norm * h_prev)[k_block]
    # int8 adj tile -> bf16 (exact for 0/1); hi/lo bf16 split of x gives
    # near-f32 accuracy on the native bf16 MXU path (no f32 emulation).
    adj = adj_ref[...].astype(jnp.bfloat16)
    if x_resident:
        start = pl.multiple_of(kk * tk, tk)
        xhi = xhi_ref[pl.ds(start, tk), :]
        xlo = xlo_ref[pl.ds(start, tk), :]
    else:
        xhi = xhi_ref[...]
        xlo = xlo_ref[...]
    acc_ref[...] += (jnp.dot(adj, xhi, preferred_element_type=jnp.float32) +
                     jnp.dot(adj, xlo, preferred_element_type=jnp.float32))

    @pl.when(kk == pl.num_programs(1) - 1)
    def _finalize():
        # Left norm applied once per row block (hoisted out of the k loop).
        h_last = norm_ref[...] * acc_ref[...]                # [tm, in_dim] f32
        if split_cols:
            # concat with out_dim % 128 == 0: each hop writes its own
            # lane-aligned column slice (no zero-padded weights / wasted MXU).
            for h in range(num_hops - 1):
                out_ref[:, h * out_dim:(h + 1) * out_dim] = jnp.dot(
                    prev_ref[h], w_ref[h],
                    preferred_element_type=jnp.float32).astype(out_ref.dtype)
            out_ref[:, (num_hops - 1) * out_dim:num_hops * out_dim] = jnp.dot(
                h_last, w_ref[num_hops - 1],
                preferred_element_type=jnp.float32).astype(out_ref.dtype)
        else:
            # 'sum', or concat with W[k] zero-scattered into its column block
            # in the wrapper -> one contiguous lane-dense store.
            res = jnp.dot(h_last, w_ref[num_hops - 1],
                          preferred_element_type=jnp.float32)
            for h in range(num_hops - 1):
                res = res + jnp.dot(prev_ref[h], w_ref[h],
                                    preferred_element_type=jnp.float32)
            out_ref[...] = res.astype(out_ref.dtype)


def _propagate_kernel(xhi_ref, xlo_ref, norm_ref, adj_ref, out_ref, acc_ref, *,
                      tk, x_resident):
    """h_out = norm * (A @ x), x = hi/lo bf16 split of (norm * h_in)."""
    kk = pl.program_id(1)

    @pl.when(kk == 0)
    def _init():
        acc_ref[...] = jnp.zeros_like(acc_ref)

    adj = adj_ref[...].astype(jnp.bfloat16)
    if x_resident:
        start = pl.multiple_of(kk * tk, tk)
        xhi = xhi_ref[pl.ds(start, tk), :]
        xlo = xlo_ref[pl.ds(start, tk), :]
    else:
        xhi = xhi_ref[...]
        xlo = xlo_ref[...]
    acc_ref[...] += (jnp.dot(adj, xhi, preferred_element_type=jnp.float32) +
                     jnp.dot(adj, xlo, preferred_element_type=jnp.float32))

    @pl.when(kk == pl.num_programs(1) - 1)
    def _finalize():
        out_ref[...] = (norm_ref[...] * acc_ref[...]).astype(out_ref.dtype)


def _project_kernel(feat_ref, w_ref, out_ref):
    out_ref[...] = jnp.dot(feat_ref[...], w_ref[0],
                           preferred_element_type=jnp.float32).astype(out_ref.dtype)


# ---------------------------------------------------------------------------
# Wrappers
# ---------------------------------------------------------------------------

def _propagate(adj_i8, norm, h, *, n_pad, tm, tk, x_resident):
    in_dim = h.shape[1]
    xhi, xlo = _split_hi_lo(norm * h)                        # right norm hoisted
    x_rows = n_pad if x_resident else tk
    x_spec = (pl.BlockSpec((n_pad, in_dim), lambda i, k: (0, 0)) if x_resident
              else pl.BlockSpec((tk, in_dim), lambda i, k: (k, 0)))
    vmem = (2 * tm * tk + tm * tk * 2 + 2 * 2 * x_rows * in_dim * 2
            + 2 * tm * 4 + 2 * tm * in_dim * 4 + tm * in_dim * 4)
    cost = pl.CostEstimate(
        flops=4 * n_pad * n_pad * in_dim, transcendentals=0,
        bytes_accessed=n_pad * n_pad + 12 * n_pad * in_dim)
    return pl.pallas_call(
        functools.partial(_propagate_kernel, tk=tk, x_resident=x_resident),
        out_shape=jax.ShapeDtypeStruct((n_pad, in_dim), jnp.float32),
        grid=(n_pad // tm, n_pad // tk),
        in_specs=[x_spec, x_spec,
                  pl.BlockSpec((tm, 1), lambda i, k: (i, 0)),
                  pl.BlockSpec((tm, tk), lambda i, k: (i, k))],
        out_specs=pl.BlockSpec((tm, in_dim), lambda i, k: (i, 0)),
        scratch_shapes=[pltpu.VMEM((tm, in_dim), jnp.float32)],
        compiler_params=_compiler_params(vmem),
        cost_estimate=cost,
    )(xhi, xlo, norm, adj_i8)


def mixhop_layer(adj, norm, feat, weights, *, combine="concat"):
    """Pallas MixHop forward.

    adj:     [N, N] dense 0/1 adjacency (adj[i, j]=1 iff edge j -> i), or the
             pre-padded int8 adjacency returned by prepare_adjacency(adj)
             (preferred: hoists the pad+cast out of the per-call path).
    norm:    [N, 1] symmetric norm D^{-1/2}
    feat:    [N, in_dim] node features
    weights: [num_hops, in_dim, out_dim]
    """
    if combine not in ("concat", "sum"):
        raise ValueError("Combine method must be 'concat' or 'sum'")

    N, in_dim = feat.shape
    num_hops, w_in, out_dim = weights.shape
    assert w_in == in_dim

    n_pad, tm, tk = _choose_tiles(N)
    f32 = jnp.float32
    feat_p = _pad_rows(feat.astype(f32), n_pad)
    norm_p = _pad_rows(norm.astype(f32), n_pad)
    weights = weights.astype(f32)

    if num_hops == 1:  # degenerate: no propagation, just the hop-0 projection
        out = pl.pallas_call(
            _project_kernel,
            out_shape=jax.ShapeDtypeStruct((n_pad, out_dim), feat.dtype),
            grid=(n_pad // tm,),
            in_specs=[pl.BlockSpec((tm, in_dim), lambda i: (i, 0)),
                      pl.BlockSpec((1, in_dim, out_dim), lambda i: (0, 0, 0))],
            out_specs=pl.BlockSpec((tm, out_dim), lambda i: (i, 0)),
            compiler_params=pltpu.CompilerParams(
                dimension_semantics=("parallel",)),
        )(feat_p, weights)
        return out[:N]

    if adj.dtype == jnp.int8 and adj.shape == (n_pad, n_pad):
        adj_p = adj                        # already prepared by the caller
    else:
        adj_p = prepare_adjacency(adj)

    # x residency: keep hi/lo of norm*h in VMEM only while the double-buffered
    # footprint (8 bytes per element) is small; otherwise stream per k tile.
    x_resident = (n_pad * in_dim * 8) <= (6 << 20)

    # Hop features 0 .. num_hops-2; each extra propagation is its own tiled
    # pass (hop k needs the complete hop k-1 result).  For the default
    # num_hops=2 this loop is empty and everything runs in the fused kernel.
    hops = [feat_p]
    for _ in range(num_hops - 2):
        hops.append(_propagate(adj_p, norm_p, hops[-1], n_pad=n_pad, tm=tm,
                               tk=tk, x_resident=x_resident))
    prev = jnp.stack(hops, axis=0)                     # [num_hops-1, n_pad, in_dim]
    xhi, xlo = _split_hi_lo(norm_p * hops[-1])         # right norm hoisted, split once

    split_cols = (combine == "concat") and (out_dim % 128 == 0)
    if combine == "sum":
        out_cols, w_cols, w_k = out_dim, out_dim, weights
    elif split_cols:
        out_cols, w_cols, w_k = num_hops * out_dim, out_dim, weights
    else:
        # concat with out_dim not lane-aligned: zero-scatter each W[k] into its
        # output column block so the kernel writes one lane-dense store.
        out_cols = num_hops * out_dim
        w_cols = out_cols
        w_k = jnp.zeros((num_hops, in_dim, out_cols), f32)
        for h in range(num_hops):
            w_k = w_k.at[h, :, h * out_dim:(h + 1) * out_dim].set(weights[h])

    x_rows = n_pad if x_resident else tk
    x_spec = (pl.BlockSpec((n_pad, in_dim), lambda i, k: (0, 0)) if x_resident
              else pl.BlockSpec((tk, in_dim), lambda i, k: (k, 0)))

    vmem = (2 * tm * tk + tm * tk * 2                  # adj int8 (x2 buf) + bf16 tile
            + 2 * 2 * x_rows * in_dim * 2              # x hi/lo, double-buffered
            + 2 * (num_hops - 1) * tm * in_dim * 4     # prev hops
            + 2 * tm * 4                               # norm
            + 2 * num_hops * in_dim * w_cols * 4       # weights
            + 2 * tm * out_cols * 4                    # output block
            + tm * in_dim * 4)                         # f32 accumulator
    x_bytes = 4 * n_pad * in_dim if x_resident else (n_pad // tm) * 4 * n_pad * in_dim
    cost = pl.CostEstimate(
        flops=4 * n_pad * n_pad * in_dim + 2 * num_hops * n_pad * in_dim * w_cols,
        transcendentals=0,
        bytes_accessed=(n_pad * n_pad + x_bytes
                        + 4 * (num_hops - 1) * n_pad * in_dim
                        + 4 * n_pad * out_cols))

    out = pl.pallas_call(
        functools.partial(_mixhop_fused_kernel, tk=tk, num_hops=num_hops,
                          out_dim=out_dim, x_resident=x_resident,
                          split_cols=split_cols),
        out_shape=jax.ShapeDtypeStruct((n_pad, out_cols), feat.dtype),
        grid=(n_pad // tm, n_pad // tk),
        in_specs=[
            pl.BlockSpec((num_hops - 1, tm, in_dim), lambda i, k: (0, i, 0)),
            x_spec, x_spec,
            pl.BlockSpec((tm, 1), lambda i, k: (i, 0)),
            pl.BlockSpec((tm, tk), lambda i, k: (i, k)),
            pl.BlockSpec((num_hops, in_dim, w_cols), lambda i, k: (0, 0, 0)),
        ],
        out_specs=pl.BlockSpec((tm, out_cols), lambda i, k: (i, 0)),
        scratch_shapes=[pltpu.VMEM((tm, in_dim), jnp.float32)],
        compiler_params=_compiler_params(vmem),
        cost_estimate=cost,
    )(prev, xhi, xlo, norm_p, adj_p, w_k)
    return out[:N]


def mixhop_reference(adj, norm, feat, weights, combine="concat"):
    hi = jax.lax.Precision.HIGHEST
    num_hops = weights.shape[0]
    h = feat
    outs = [jnp.dot(feat, weights[0], precision=hi)]
    for k in range(1, num_hops):
        h = norm * jnp.dot(adj, norm * h, precision=hi)
        outs.append(jnp.dot(h, weights[k], precision=hi))
    if combine == "concat":
        return jnp.concatenate(outs, axis=1)
    return jnp.stack(outs).sum(axis=0)


if __name__ == "__main__":
    key = jax.random.PRNGKey(0)
    k_adj, k_feat, k_w = jax.random.split(key, 3)

    N = 300          # not tile-aligned -> exercises padding + multi-block reduction
    in_dim = 32
    out_dim = 32
    num_hops = 2

    # Deterministic random symmetric graph (no self loops), density ~0.1
    a = (jax.random.uniform(k_adj, (N, N)) < 0.1).astype(jnp.float32)
    adj = jnp.maximum(a, a.T) * (1.0 - jnp.eye(N, dtype=jnp.float32))

    # Symmetric normalization D^{-1/2} (clamp degree to avoid div-by-zero)
    deg = jnp.maximum(adj.sum(axis=1, keepdims=True), 1.0)
    norm = 1.0 / jnp.sqrt(deg)                                # [N, 1]

    feat = jax.random.normal(k_feat, (N, in_dim), dtype=jnp.float32)

    # Xavier-uniform init (matches nn.init.xavier_uniform_)
    bound = jnp.sqrt(6.0 / (in_dim + out_dim))
    weights = jax.random.uniform(k_w, (num_hops, in_dim, out_dim),
                                 minval=-bound, maxval=bound, dtype=jnp.float32)

    # Hoist the adjacency pad + int8 cast out of the per-call path.
    adj_prep = jax.block_until_ready(prepare_adjacency(adj))

    # num_hops=2, combine='concat' (module default): fully fused kernel.
    run = jax.jit(functools.partial(mixhop_layer, combine="concat"))
    out = jax.block_until_ready(run(adj_prep, norm, feat, weights))
    ref = mixhop_reference(adj, norm, feat, weights, combine="concat")
    assert out.shape == (N, num_hops * out_dim), out.shape
    assert jnp.allclose(out, ref, atol=1e-3, rtol=1e-3), \
        float(jnp.max(jnp.abs(out - ref)))

    # num_hops=3, combine='sum': exercises the propagation pass as well.
    weights3 = jax.random.uniform(k_w, (3, in_dim, out_dim),
                                  minval=-bound, maxval=bound, dtype=jnp.float32)
    run3 = jax.jit(functools.partial(mixhop_layer, combine="sum"))
    out3 = jax.block_until_ready(run3(adj_prep, norm, feat, weights3))
    ref3 = mixhop_reference(adj, norm, feat, weights3, combine="sum")
    assert out3.shape == (N, out_dim), out3.shape
    assert jnp.allclose(out3, ref3, atol=1e-3, rtol=1e-3), \
        float(jnp.max(jnp.abs(out3 - ref3)))

    print("KERNEL_OK")
</pallas_src>

<mosaic_0001>
module attributes {stable_mosaic.version = 11 : i64} {
  func.func @_mixhop_fused_kernel(%arg0: i32, %arg1: i32, %arg2: memref<1x128x32xf32, #tpu.memory_space<vmem>>, %arg3: memref<384x32xbf16, #tpu.memory_space<vmem>>, %arg4: memref<384x32xbf16, #tpu.memory_space<vmem>>, %arg5: memref<128x1xf32, #tpu.memory_space<vmem>>, %arg6: memref<128x128xi8, #tpu.memory_space<vmem>>, %arg7: memref<2x32x64xf32, #tpu.memory_space<vmem>>, %arg8: memref<128x64xf32, #tpu.memory_space<vmem>>, %arg9: memref<128x32xf32, #tpu.memory_space<vmem>>) attributes {dimension_semantics = [#tpu.dimension_semantics<parallel>, #tpu.dimension_semantics<arbitrary>], iteration_bounds = array<i64: 3, 3>, scalar_prefetch = 0 : i64, scratch_operands = 1 : i64, tpu.core_type = #tpu.core_type<tc>, window_params = [{transform_indices = @transform_0, window_bounds = array<i64: 1, 128, 32>}, {pipeline_mode = #tpu.pipeline_mode<synchronous>, transform_indices = @transform_1, window_bounds = array<i64: 384, 32>}, {pipeline_mode = #tpu.pipeline_mode<synchronous>, transform_indices = @transform_2, window_bounds = array<i64: 384, 32>}, {transform_indices = @transform_3, window_bounds = array<i64: 128, 1>}, {transform_indices = @transform_4, window_bounds = array<i64: 128, 128>}, {pipeline_mode = #tpu.pipeline_mode<synchronous>, transform_indices = @transform_5, window_bounds = array<i64: 2, 32, 64>}, {transform_indices = @transform_6, window_bounds = array<i64: 128, 64>}]} {
    %c0_i32 = arith.constant 0 : i32
    %0 = arith.cmpi eq, %arg1, %c0_i32 : i32
    %1 = arith.extui %0 : i1 to i32
    %c0_i32_0 = arith.constant 0 : i32
    %2 = arith.cmpi ne, %1, %c0_i32_0 : i32
    scf.if %2 {
      %cst_10 = arith.constant 0.000000e+00 : f32
      %20 = vector.broadcast %cst_10 : f32 to vector<128x32xf32>
      %c0_11 = arith.constant 0 : index
      %c0_12 = arith.constant 0 : index
      %21 = vector.load %arg9[%c0_11, %c0_12] : memref<128x32xf32, #tpu.memory_space<vmem>>, vector<128x32xf32>
      tpu.vector_store %arg9[%c0_11, %c0_12], %20 {strides = array<i32>} : memref<128x32xf32, #tpu.memory_space<vmem>>, vector<128x32xf32>,
    } else {
    }
    %c0 = arith.constant 0 : index
    %c0_1 = arith.constant 0 : index
    %3 = vector.load %arg6[%c0, %c0_1] : memref<128x128xi8, #tpu.memory_space<vmem>>, vector<128x128xi8>
    %4 = arith.sitofp %3 : vector<128x128xi8> to vector<128x128xbf16>
    %c128_i32 = arith.constant 128 : i32
    %5 = arith.muli %arg1, %c128_i32 : i32
    %6 = tpu.assume_multiple %5, 128 : i32
    %7 = arith.index_cast %6 : i32 to index
    %c0_2 = arith.constant 0 : index
    %8 = vector.load %arg3[%7, %c0_2] : memref<384x32xbf16, #tpu.memory_space<vmem>>, vector<128x32xbf16>
    %9 = arith.index_cast %6 : i32 to index
    %c0_3 = arith.constant 0 : index
    %10 = vector.load %arg4[%9, %c0_3] : memref<384x32xbf16, #tpu.memory_space<vmem>>, vector<128x32xbf16>
    %c0_4 = arith.constant 0 : index
    %c0_5 = arith.constant 0 : index
    %11 = vector.load %arg9[%c0_4, %c0_5] : memref<128x32xf32, #tpu.memory_space<vmem>>, vector<128x32xf32>
    %cst = arith.constant dense<0.000000e+00> : vector<128x32xf32>
    %12 = tpu.matmul %4, %8, %cst {dimension_numbers = #tpu.dot_dimension_numbers<[1], [0], [0], [1], [0, 0, 1, 1], [], []>} : vector<128x128xbf16>, vector<128x32xbf16>, vector<128x32xf32> -> vector<128x32xf32>
    %cst_6 = arith.constant dense<0.000000e+00> : vector<128x32xf32>
    %13 = tpu.matmul %4, %10, %cst_6 {dimension_numbers = #tpu.dot_dimension_numbers<[1], [0], [0], [1], [0, 0, 1, 1], [], []>} : vector<128x128xbf16>, vector<128x32xbf16>, vector<128x32xf32> -> vector<128x32xf32>
    %14 = arith.addf %12, %13 : vector<128x32xf32>
    %15 = arith.addf %11, %14 : vector<128x32xf32>
    %c0_7 = arith.constant 0 : index
    %c0_8 = arith.constant 0 : index
    %16 = vector.load %arg9[%c0_7, %c0_8] : memref<128x32xf32, #tpu.memory_space<vmem>>, vector<128x32xf32>
    tpu.vector_store %arg9[%c0_7, %c0_8], %15 {strides = array<i32>} : memref<128x32xf32, #tpu.memory_space<vmem>>, vector<128x32xf32>,
    %c2_i32 = arith.constant 2 : i32
    %17 = arith.cmpi eq, %arg1, %c2_i32 : i32
    %18 = arith.extui %17 : i1 to i32
    %c0_i32_9 = arith.constant 0 : i32
    %19 = arith.cmpi ne, %18, %c0_i32_9 : i32
    scf.if %19 {
      %c0_10 = arith.constant 0 : index
      %c0_11 = arith.constant 0 : index
      %20 = vector.load %arg5[%c0_10, %c0_11] : memref<128x1xf32, #tpu.memory_space<vmem>>, vector<128x1xf32>
      %c0_12 = arith.constant 0 : index
      %c0_13 = arith.constant 0 : index
      %21 = vector.load %arg9[%c0_12, %c0_13] : memref<128x32xf32, #tpu.memory_space<vmem>>, vector<128x32xf32>
      %22 = vector.broadcast %20 : vector<128x1xf32> to vector<128x32xf32>
      %23 = arith.mulf %22, %21 : vector<128x32xf32>
      %c1 = arith.constant 1 : index
      %c0_14 = arith.constant 0 : index
      %c0_15 = arith.constant 0 : index
      %24 = vector.load %arg7[%c1, %c0_14, %c0_15] : memref<2x32x64xf32, #tpu.memory_space<vmem>>, vector<1x32x64xf32>
      %25 = vector.shape_cast %24 : vector<1x32x64xf32> to vector<32x64xf32>
      %cst_16 = arith.constant dense<0.000000e+00> : vector<128x64xf32>
      %26 = tpu.matmul %23, %25, %cst_16 {dimension_numbers = #tpu.dot_dimension_numbers<[1], [0], [0], [1], [0, 0, 1, 1], [], []>} : vector<128x32xf32>, vector<32x64xf32>, vector<128x64xf32> -> vector<128x64xf32>
      %c0_17 = arith.constant 0 : index
      %c0_18 = arith.constant 0 : index
      %c0_19 = arith.constant 0 : index
      %27 = vector.load %arg2[%c0_17, %c0_18, %c0_19] : memref<1x128x32xf32, #tpu.memory_space<vmem>>, vector<1x128x32xf32>
      %28 = vector.shape_cast %27 : vector<1x128x32xf32> to vector<128x32xf32>
      %c0_20 = arith.constant 0 : index
      %c0_21 = arith.constant 0 : index
      %c0_22 = arith.constant 0 : index
      %29 = vector.load %arg7[%c0_20, %c0_21, %c0_22] : memref<2x32x64xf32, #tpu.memory_space<vmem>>, vector<1x32x64xf32>
      %30 = vector.shape_cast %29 : vector<1x32x64xf32> to vector<32x64xf32>
      %cst_23 = arith.constant dense<0.000000e+00> : vector<128x64xf32>
      %31 = tpu.matmul %28, %30, %cst_23 {dimension_numbers = #tpu.dot_dimension_numbers<[1], [0], [0], [1], [0, 0, 1, 1], [], []>} : vector<128x32xf32>, vector<32x64xf32>, vector<128x64xf32> -> vector<128x64xf32>
      %32 = arith.addf %26, %31 : vector<128x64xf32>
      %c0_24 = arith.constant 0 : index
      %c0_25 = arith.constant 0 : index
      %33 = vector.load %arg8[%c0_24, %c0_25] : memref<128x64xf32, #tpu.memory_space<vmem>>, vector<128x64xf32>
      tpu.vector_store %arg8[%c0_24, %c0_25], %32 {strides = array<i32>} : memref<128x64xf32, #tpu.memory_space<vmem>>, vector<128x64xf32>,
    } else {
    }
    return
  }
  func.func @transform_0(%arg0: i32, %arg1: i32) -> (i32, i32, i32) {
    %c0_i32 = arith.constant 0 : i32
    %c0_i32_0 = arith.constant 0 : i32
    %c0_i32_1 = arith.constant 0 : i32
    return %c0_i32, %arg0, %c0_i32_0 : i32, i32, i32
  }
  func.func @transform_1(%arg0: i32, %arg1: i32) -> (i32, i32) {
    %c0_i32 = arith.constant 0 : i32
    %c0_i32_0 = arith.constant 0 : i32
    %c0_i32_1 = arith.constant 0 : i32
    return %c0_i32, %c0_i32_0 : i32, i32
  }
  func.func @transform_2(%arg0: i32, %arg1: i32) -> (i32, i32) {
    %c0_i32 = arith.constant 0 : i32
    %c0_i32_0 = arith.constant 0 : i32
    %c0_i32_1 = arith.constant 0 : i32
    return %c0_i32, %c0_i32_0 : i32, i32
  }
  func.func @transform_3(%arg0: i32, %arg1: i32) -> (i32, i32) {
    %c0_i32 = arith.constant 0 : i32
    %c0_i32_0 = arith.constant 0 : i32
    return %arg0, %c0_i32 : i32, i32
  }
  func.func @transform_4(%arg0: i32, %arg1: i32) -> (i32, i32) {
    %c0_i32 = arith.constant 0 : i32
    return %arg0, %arg1 : i32, i32
  }
  func.func @transform_5(%arg0: i32, %arg1: i32) -> (i32, i32, i32) {
    %c0_i32 = arith.constant 0 : i32
    %c0_i32_0 = arith.constant 0 : i32
    %c0_i32_1 = arith.constant 0 : i32
    %c0_i32_2 = arith.constant 0 : i32
    return %c0_i32, %c0_i32_0, %c0_i32_1 : i32, i32, i32
  }
  func.func @transform_6(%arg0: i32, %arg1: i32) -> (i32, i32) {
    %c0_i32 = arith.constant 0 : i32
    %c0_i32_0 = arith.constant 0 : i32
    return %arg0, %c0_i32 : i32, i32
  }
}

</mosaic_0001>

<llo_original>
// kernel: mixhop_layer.1
$region0: #{mixhop_layer.1}
  #allocation0 [shape = 'u32[]', space=smem, size = 0x4, offset = 0x4, fixed_abs, tag = 'smem constant byte address 0x4 - core index']
  #allocation1 [shape = 'u32[72,128]{1,0:T(1,128)}', space=vmem, size = 0x9000, scoped, tag = 'internal scratch']
  #allocation2 [shape = 'f32[128,32]{1,0:T(8,128)}', space=vmem, size = 0x10000, scoped, tag = 'scratch operand']
  %s0 = inlined_call_operand.vmem [shape: f32[1,384,32], index: 0, kind: input, shape index: {}]
  %s1 = inlined_call_operand.vmem [shape: bf16[384,32], index: 1, kind: input, shape index: {}]
  %s2 = inlined_call_operand.vmem [shape: bf16[384,32], index: 2, kind: input, shape index: {}]
  %s3 = inlined_call_operand.vmem [shape: f32[384,1], index: 3, kind: input, shape index: {}]
  %s4 = inlined_call_operand.vmem [shape: s8[384,384], index: 4, kind: input, shape index: {}]
  %s5 = inlined_call_operand.vmem [shape: f32[2,32,64], index: 5, kind: input, shape index: {}]
  %s6 = inlined_call_operand.vmem [shape: f32[384,64], index: 6, kind: output, shape index: {}]
  %s7 = sld [smem:[#allocation0]]
  $region103: #{mixhop_layer.1} parent=0
    _
  %s9 = ssub.s32 1, %s7
  %s10 = scalar_select 0, %s9, %s7
  $region1: #{mixhop_layer.1} parent=0
    #allocation3 [shape = 'u8[32768]{0}', space=vmem, size = 0x8000, scoped, tag = 'input window, operand 4']
    loop: start=0, step=1, limit=11
    $region2: #{mixhop_layer.1} parent=1 // loop_pre_header
      _
    $region3: #{mixhop_layer.1} parent=1 // loop_header
      %s12 = sphi 0, %s16
      %p13 = scmp.ge.s32.totalorder %s12, 11
      %s19 = sphi 0, %s31
      %s20 = sphi 0, %s27
      %s21 = sphi 0, %s19
      %s22 = sphi 0, %s20
      %s23 = sphi 0, %s21
      %s24 = sphi 0, %s22
      %s34 = sphi 0, %s36
      %s37 = sphi 0, %s34
      %s38 = sphi 0, %s37
      %s54 = sphi 0, %s38
      %s58 = sphi 0, %s58
      %s60 = sphi 0, %s58
      %s61 = sphi 0, %s60
      %s75 = sphi 0, %s61
      %s79 = sphi 0, %s79
      %s81 = sphi 0, %s79
      %s82 = sphi 0, %s81
      %s96 = sphi 0, %s82
      %s102 = sphi 0, %s104
      %s105 = sphi 0, %s102
      %s106 = sphi 0, %s105
      %s122 = sphi 0, %s106
      %s130 = sphi 0, %s132
      %s133 = sphi 0, %s130
      %s134 = sphi 0, %s133
      %s150 = sphi 0, %s134
      %s154 = sphi 0, %s154
      %s156 = sphi 0, %s154
      %s157 = sphi 0, %s156
      %s171 = sphi 0, %s157
      %s177 = sphi 0, %s179
      %s180 = sphi 0, %s177
      %s181 = sphi 0, %s180
      %s197 = sphi 0, %s181
    $region4: #{mixhop_layer.1} parent=1 // loop_header_branch
      %15 = sbr.rel (%p13) target = $region8
    $region5: #{mixhop_layer.1} parent=1 // loop_body
      %s17 = ssub.s32 %s12, 1
      %s18 = ssub.s32 %s12, 2
      %s25 = sadd.s32 1, %s20
      %p26 = scmp.ge.s32.totalorder %s25, 3
      %s27 = scalar_select %p26, 0, %s25
      %s28 = sadd.s32 1, %s19
      %s29 = scalar_select %p26, %s28, %s19
      %p30 = scmp.ge.s32.totalorder %s29, 3
      %s31 = scalar_select %p30, 0, %s29
      %s32 = ssub.s32 %s19, %s31
      %p33 = scmp.eq.s32.totalorder %s32, 0
      %s35 = sadd.s32 %s34, 1
      %s36 = scalar_select %p33, %s34, %s35
      %p39 = pneg %p33
      %p40 = scmp.eq.s32.totalorder %s12, 8
      %p41 = por %p39, %p40
      %p42 = scmp.ne.s32.totalorder %s34, %s37
      %p43 = scmp.eq.s32.totalorder %s12, 0
      %p44 = por %p42, %p43
      %p45 = scmp.ne.s32.totalorder %s34, %s37
      %p46 = scmp.eq.s32.totalorder %s17, 8
      %p47 = por %p45, %p46
      %p48 = scmp.ne.s32.totalorder %s37, %s38
      %p49 = scmp.eq.s32.totalorder %s17, 0
      %p50 = por %p48, %p49
      %p51 = scmp.ne.s32.totalorder %s37, %s38
      %p52 = scmp.eq.s32.totalorder %s18, 8
      %p53 = por %p51, %p52
      %p55 = scmp.ne.s32.totalorder %s38, %s54
      %p56 = scmp.eq.s32.totalorder %s18, 0
      %p57 = por %p55, %p56
      %s59 = sadd.s32 %s58, 1
      %p62 = scmp.eq.s32.totalorder %s12, 8
      %p63 = scmp.ne.s32.totalorder %s58, %s60
      %p64 = scmp.eq.s32.totalorder %s12, 0
      %p65 = por %p63, %p64
      %p66 = scmp.ne.s32.totalorder %s58, %s60
      %p67 = scmp.eq.s32.totalorder %s17, 8
      %p68 = por %p66, %p67
      %p69 = scmp.ne.s32.totalorder %s60, %s61
      %p70 = scmp.eq.s32.totalorder %s17, 0
      %p71 = por %p69, %p70
      %p72 = scmp.ne.s32.totalorder %s60, %s61
      %p73 = scmp.eq.s32.totalorder %s18, 8
      %p74 = por %p72, %p73
      %p76 = scmp.ne.s32.totalorder %s61, %s75
      %p77 = scmp.eq.s32.totalorder %s18, 0
      %p78 = por %p76, %p77
      %s80 = sadd.s32 %s79, 1
      %p83 = scmp.eq.s32.totalorder %s12, 8
      %p84 = scmp.ne.s32.totalorder %s79, %s81
      %p85 = scmp.eq.s32.totalorder %s12, 0
      %p86 = por %p84, %p85
      %p87 = scmp.ne.s32.totalorder %s79, %s81
      %p88 = scmp.eq.s32.totalorder %s17, 8
      %p89 = por %p87, %p88
      %p90 = scmp.ne.s32.totalorder %s81, %s82
      %p91 = scmp.eq.s32.totalorder %s17, 0
      %p92 = por %p90, %p91
      %p93 = scmp.ne.s32.totalorder %s81, %s82
      %p94 = scmp.eq.s32.totalorder %s18, 8
      %p95 = por %p93, %p94
      %p97 = scmp.ne.s32.totalorder %s82, %s96
      %p98 = scmp.eq.s32.totalorder %s18, 0
      %p99 = por %p97, %p98
      %s100 = ssub.s32 %s19, %s31
      %p101 = scmp.eq.s32.totalorder %s100, 0
      %s103 = sadd.s32 %s102, 1
      %s104 = scalar_select %p101, %s102, %s103
      %p107 = pneg %p101
      %p108 = scmp.eq.s32.totalorder %s12, 8
      %p109 = por %p107, %p108
      %p110 = scmp.ne.s32.totalorder %s102, %s105
      %p111 = scmp.eq.s32.totalorder %s12, 0
      %p112 = por %p110, %p111
      %p113 = scmp.ne.s32.totalorder %s102, %s105
      %p114 = scmp.eq.s32.totalorder %s17, 8
      %p115 = por %p113, %p114
      %p116 = scmp.ne.s32.totalorder %s105, %s106
      %p117 = scmp.eq.s32.totalorder %s17, 0
      %p118 = por %p116, %p117
      %p119 = scmp.ne.s32.totalorder %s105, %s106
      %p120 = scmp.eq.s32.totalorder %s18, 8
      %p121 = por %p119, %p120
      %p123 = scmp.ne.s32.totalorder %s106, %s122
      %p124 = scmp.eq.s32.totalorder %s18, 0
      %p125 = por %p123, %p124
      %s126 = ssub.s32 %s19, %s31
      %s127 = ssub.s32 %s20, %s27
      %s128 = sor.u32 %s126, %s127
      %p129 = scmp.eq.s32.totalorder %s128, 0
      %s131 = sadd.s32 %s130, 1
      %s132 = scalar_select %p129, %s130, %s131
      %p135 = pneg %p129
      %p136 = scmp.eq.s32.totalorder %s12, 8
      %p137 = por %p135, %p136
      %p138 = scmp.ne.s32.totalorder %s130, %s133
      %p139 = scmp.eq.s32.totalorder %s12, 0
      %p140 = por %p138, %p139
      %p141 = scmp.ne.s32.totalorder %s130, %s133
      %p142 = scmp.eq.s32.totalorder %s17, 8
      %p143 = por %p141, %p142
      %p144 = scmp.ne.s32.totalorder %s133, %s134
      %p145 = scmp.eq.s32.totalorder %s17, 0
      %p146 = por %p144, %p145
      %p147 = scmp.ne.s32.totalorder %s133, %s134
      %p148 = scmp.eq.s32.totalorder %s18, 8
      %p149 = por %p147, %p148
      %p151 = scmp.ne.s32.totalorder %s134, %s150
      %p152 = scmp.eq.s32.totalorder %s18, 0
      %p153 = por %p151, %p152
      %s155 = sadd.s32 %s154, 1
      %p158 = scmp.eq.s32.totalorder %s12, 8
      %p159 = scmp.ne.s32.totalorder %s154, %s156
      %p160 = scmp.eq.s32.totalorder %s12, 0
      %p161 = por %p159, %p160
      %p162 = scmp.ne.s32.totalorder %s154, %s156
      %p163 = scmp.eq.s32.totalorder %s17, 8
      %p164 = por %p162, %p163
      %p165 = scmp.ne.s32.totalorder %s156, %s157
      %p166 = scmp.eq.s32.totalorder %s17, 0
      %p167 = por %p165, %p166
      %p168 = scmp.ne.s32.totalorder %s156, %s157
      %p169 = scmp.eq.s32.totalorder %s18, 8
      %p170 = por %p168, %p169
      %p172 = scmp.ne.s32.totalorder %s157, %s171
      %p173 = scmp.eq.s32.totalorder %s18, 0
      %p174 = por %p172, %p173
      %s175 = ssub.s32 %s19, %s31
      %p176 = scmp.eq.s32.totalorder %s175, 0
      %s178 = sadd.s32 %s177, 1
      %s179 = scalar_select %p176, %s177, %s178
      %p182 = pneg %p176
      %p183 = scmp.eq.s32.totalorder %s12, 8
      %p184 = por %p182, %p183
      %p185 = scmp.ne.s32.totalorder %s177, %s180
      %p186 = scmp.eq.s32.totalorder %s12, 0
      %p187 = por %p185, %p186
      %p188 = scmp.ne.s32.totalorder %s177, %s180
      %p189 = scmp.eq.s32.totalorder %s17, 8
      %p190 = por %p188, %p189
      %p191 = scmp.ne.s32.totalorder %s180, %s181
      %p192 = scmp.eq.s32.totalorder %s17, 0
      %p193 = por %p191, %p192
      %p194 = scmp.ne.s32.totalorder %s180, %s181
      %p195 = scmp.eq.s32.totalorder %s18, 8
      %p196 = por %p194, %p195
      %p198 = scmp.ne.s32.totalorder %s181, %s197
      %p199 = scmp.eq.s32.totalorder %s18, 0
      %p200 = por %p198, %p199
      %p201 = scmp.le.s32.totalorder 1, %s12
      %p202 = scmp.lt.s32.totalorder %s12, 10
      %p203 = pnand %p201, %p202
      %p204 = pneg %p203
      // Predicated region
      $region9: #{mixhop_layer.1} parent=5 // pred_check
        _
      $region10: #{mixhop_layer.1} parent=5 // pred_check_branch
        %206 = sbr.rel (%p203) target = $region12
      $region11: #{mixhop_layer.1} parent=5 // pred_region
        %s207 = ssub.s32 %s12, 1
        // Predicated region
        $region13: #{mixhop_layer.1} parent=11 // pred_check
          %p208 = pneg %p71
        $region14: #{mixhop_layer.1} parent=11 // pred_check_branch
          %210 = sbr.rel (%p208) target = $region16
        $region15: #{mixhop_layer.1} parent=11 // pred_region
          _
        $region16: #{mixhop_layer.1} parent=11 // pred_fallthru
          _
        // Predicated region
        $region17: #{mixhop_layer.1} parent=11 // pred_check
          %p211 = pneg %p92
        $region18: #{mixhop_layer.1} parent=11 // pred_check_branch
          %213 = sbr.rel (%p211) target = $region20
        $region19: #{mixhop_layer.1} parent=11 // pred_region
          _
        $region20: #{mixhop_layer.1} parent=11 // pred_fallthru
          _
        // Predicated region
        $region21: #{mixhop_layer.1} parent=11 // pred_check
          %p214 = pneg %p167
        $region22: #{mixhop_layer.1} parent=11 // pred_check_branch
          %216 = sbr.rel (%p214) target = $region24
        $region23: #{mixhop_layer.1} parent=11 // pred_region
          _
        $region24: #{mixhop_layer.1} parent=11 // pred_fallthru
          _
      $region12: #{mixhop_layer.1} parent=5 // pred_fallthru
        _
      %p217 = scmp.lt.s32.totalorder %s12, 9
      // Predicated region
      $region25: #{mixhop_layer.1} parent=5 // pred_check
        %p218 = pneg %p217
      $region26: #{mixhop_layer.1} parent=5 // pred_check_branch
        %220 = sbr.rel (%p218) target = $region28
      $region27: #{mixhop_layer.1} parent=5 // pred_region
        // Predicated region
        $region29: #{mixhop_layer.1} parent=27 // pred_check
          %p221 = pneg %p44
        $region30: #{mixhop_layer.1} parent=27 // pred_check_branch
          %223 = sbr.rel (%p221) target = $region32
        $region31: #{mixhop_layer.1} parent=27 // pred_region
          %s224 = smul.u32 16, %s19
          %p225 = scmp.lt.s32.totalorder %s224, 47
          %s226 = scalar_select %p225, %s224, 47
          %s227 = smul.addr %s226, 8
          %s228 = scalar_lea.vmem %s0, %s227
          %s229 = smul.u32 16, %s19
        $region32: #{mixhop_layer.1} parent=27 // pred_fallthru
          _
        // Predicated region
        $region33: #{mixhop_layer.1} parent=27 // pred_check
          %p230 = pneg %p112
        $region34: #{mixhop_layer.1} parent=27 // pred_check_branch
          %232 = sbr.rel (%p230) target = $region36
        $region35: #{mixhop_layer.1} parent=27 // pred_region
          %s233 = smul.u32 16, %s19
          %p234 = scmp.lt.s32.totalorder %s233, 47
          %s235 = scalar_select %p234, %s233, 47
          %s236 = smul.addr %s235, 8
          %s237 = scalar_lea.vmem %s3, %s236
          %s238 = smul.u32 16, %s19
        $region36: #{mixhop_layer.1} parent=27 // pred_fallthru
          _
        // Predicated region
        $region37: #{mixhop_layer.1} parent=27 // pred_check
          %p239 = pneg %p140
        $region38: #{mixhop_layer.1} parent=27 // pred_check_branch
          %241 = sbr.rel (%p239) target = $region40
        $region39: #{mixhop_layer.1} parent=27 // pred_region
          %s242 = sand.u32 %s130, 1
          %s243 = sand.u32 %s130, 1
          %s244 = smul.addr %s243, 32
          %s245 = scalar_lea.vmem [#allocation3], %s244
          %s246 = smul.u32 4, %s19
          %s247 = smul.addr %s246, 3
          %s248 = sadd.s32 %s20, %s247
          %s249 = smul.addr %s248, 8
          %s250 = scalar_lea.vmem %s4, %s249
          // Predicated region
          $region41: #{mixhop_layer.1} parent=39 // pred_check
            _
          $region42: #{mixhop_layer.1} parent=39 // pred_check_branch
            %252 = sbr.rel (0) target = $region44
          $region43: #{mixhop_layer.1} parent=39 // pred_region
            // Predicated region
            $region45: #{mixhop_layer.1} parent=43 // pred_check
              _
            $region46: #{mixhop_layer.1} parent=43 // pred_check_branch
              %254 = sbr.rel (0) target = $region48
            $region47: #{mixhop_layer.1} parent=43 // pred_region
              // Predicated region
              $region60: #{mixhop_layer.1} parent=47 // pred_check
                _
              $region61: #{mixhop_layer.1} parent=47 // pred_check_branch
                %276 = sbr.rel (0) target = $region63
              $region62: #{mixhop_layer.1} parent=47 // pred_region
                loop: start=0, step=1, limit=1
                $region64: #{mixhop_layer.1} parent=62 // loop_pre_header
                  _
                $region65: #{mixhop_layer.1} parent=62 // loop_header
                  %s278 = sphi 0, %s282
                  %p279 = scmp.ge.s32.totalorder %s278, 1
                  %s283 = sphi %s250, %s250
                  %s284 = sphi %s245, %s245
                $region66: #{mixhop_layer.1} parent=62 // loop_header_branch
                  %281 = sbr.rel (%p279) target = $region70
                $region67: #{mixhop_layer.1} parent=62 // loop_body
                  %v285 = vld [vmem:[%s283] sm:$0xff]
                  %286 = vst [vmem:[%s284] sm:$0xff] %v285
                  %v287 = vld [vmem:[%s283 + $0x18] sm:$0xff]
                  %288 = vst [vmem:[%s284 + $0x8] sm:$0xff] %v287
                  %v289 = vld [vmem:[%s283 + $0x30] sm:$0xff]
                  %290 = vst [vmem:[%s284 + $0x10] sm:$0xff] %v289
                  %v291 = vld [vmem:[%s283 + $0x48] sm:$0xff]
                  %292 = vst [vmem:[%s284 + $0x18] sm:$0xff] %v291
                $region68: #{mixhop_layer.1} parent=62 // loop_footer
                  %s282 = sadd.s32 1, %s278
                $region69: #{mixhop_layer.1} parent=62 // loop_footer_branch
                  %277 = sbr.rel target = $region65
                $region70: #{mixhop_layer.1} parent=62 // loop_exit
                  _
              $region63: #{mixhop_layer.1} parent=47 // pred_fallthru
                _
              // Predicated region
              $region71: #{mixhop_layer.1} parent=47 // pred_check
                _
              $region72: #{mixhop_layer.1} parent=47 // pred_check_branch
                %294 = sbr.rel target = $region74
              $region73: #{mixhop_layer.1} parent=47 // pred_region
                _
              $region74: #{mixhop_layer.1} parent=47 // pred_fallthru
                _
            $region48: #{mixhop_layer.1} parent=43 // pred_fallthru
              _
            // Predicated region
            $region49: #{mixhop_layer.1} parent=43 // pred_check
              _
            $region50: #{mixhop_layer.1} parent=43 // pred_check_branch
              %256 = sbr.rel target = $region52
            $region51: #{mixhop_layer.1} parent=43 // pred_region
              %s258 = ssub.s32 256, 1
              loop: start=0, step=1, limit=1
              $region53: #{mixhop_layer.1} parent=51 // loop_pre_header
                _
              $region54: #{mixhop_layer.1} parent=51 // loop_header
                %s260 = sphi 0, %s264
                %p261 = scmp.ge.s32.totalorder %s260, 1
                %s265 = sphi %s250, %s250
                %s266 = sphi %s245, %s245
              $region55: #{mixhop_layer.1} parent=51 // loop_header_branch
                %263 = sbr.rel (%p261) target = $region59
              $region56: #{mixhop_layer.1} parent=51 // loop_body
                %v267 = vld [vmem:[%s265] sm:%s258]
                %268 = vst [vmem:[%s266] sm:%s258] %v267
                %v269 = vld [vmem:[%s265 + $0x18] sm:%s258]
                %270 = vst [vmem:[%s266 + $0x8] sm:%s258] %v269
                %v271 = vld [vmem:[%s265 + $0x30] sm:%s258]
                %272 = vst [vmem:[%s266 + $0x10] sm:%s258] %v271
                %v273 = vld [vmem:[%s265 + $0x48] sm:%s258]
                %274 = vst [vmem:[%s266 + $0x18] sm:%s258] %v273
              $region57: #{mixhop_layer.1} parent=51 // loop_footer
                %s264 = sadd.s32 1, %s260
              $region58: #{mixhop_layer.1} parent=51 // loop_footer_branch
                %259 = sbr.rel target = $region54
              $region59: #{mixhop_layer.1} parent=51 // loop_exit
                _
            $region52: #{mixhop_layer.1} parent=43 // pred_fallthru
              _
          $region44: #{mixhop_layer.1} parent=39 // pred_fallthru
            _
          %295 = vnop
        $region40: #{mixhop_layer.1} parent=27 // pred_fallthru
          _
      $region28: #{mixhop_layer.1} parent=5 // pred_fallthru
        _
      %p296 = scmp.le.s32.totalorder 1, %s12
      %p297 = scmp.lt.s32.totalorder %s12, 10
      %p298 = pnand %p296, %p297
      %p299 = pneg %p298
      // Predicated region
      $region75: #{mixhop_layer.1} parent=5 // pred_check
        _
      $region76: #{mixhop_layer.1} parent=5 // pred_check_branch
        %301 = sbr.rel (%p298) target = $region78
      $region77: #{mixhop_layer.1} parent=5 // pred_region
        %s302 = ssub.s32 %s12, 1
        %s303 = sand.u32 %s133, 1
        %s304 = sand.u32 %s133, 1
        %s305 = smul.addr %s304, 32
        %s306 = scalar_lea.vmem [#allocation3], %s305
        // Predicated region
        $region79: #{mixhop_layer.1} parent=77 // pred_check
          %p307 = pneg %p146
        $region80: #{mixhop_layer.1} parent=77 // pred_check_branch
          %309 = sbr.rel (%p307) target = $region82
        $region81: #{mixhop_layer.1} parent=77 // pred_region
          _
        $region82: #{mixhop_layer.1} parent=77 // pred_fallthru
          _
        %s310 = smul.u32 16, %s21
        %p311 = scmp.lt.s32.totalorder %s310, 47
        %s312 = scalar_select %p311, %s310, 47
        %s313 = smul.addr %s312, 8
        %s314 = scalar_lea.vmem %s0, %s313
        %p315 = pneg %p50
        %p316 = pneg %p47
        %p317 = pneg %p71
        %p318 = pneg %p68
        %p319 = pneg %p92
        %p320 = pneg %p89
        %s321 = smul.u32 16, %s21
        %p322 = scmp.lt.s32.totalorder %s321, 47
        %s323 = scalar_select %p322, %s321, 47
        %s324 = smul.addr %s323, 8
        %s325 = scalar_lea.vmem %s3, %s324
        %p326 = pneg %p118
        %p327 = pneg %p115
        %s328 = sand.u32 %s133, 1
        %s329 = sand.u32 %s133, 1
        %s330 = smul.addr %s329, 32
        %s331 = scalar_lea.vmem [#allocation3], %s330
        %p332 = pneg %p146
        %p333 = pneg %p143
        %p334 = pneg %p167
        %p335 = pneg %p164
        %p336 = pneg %p193
        %p337 = pneg %p190
        %s338 = smul.u32 16, %s21
        %p339 = scmp.lt.s32.totalorder %s338, 47
        %s340 = scalar_select %p339, %s338, 47
        %s341 = smul.addr %s340, 8
        %s342 = scalar_lea.vmem %s6, %s341
        %s343 = smul.u32 16, %s21
        %p344 = scmp.lt.s32.totalorder %s343, 47
        %s345 = scalar_select %p344, %s343, 47
        %s346 = smul.addr %s345, 8
        %s347 = scalar_lea.vmem %s0, %s346
        %s348 = smul.u32 16, %s21
        %s349 = smul.u32 16, %s21
        %p350 = scmp.lt.s32.totalorder %s349, 47
        %s351 = scalar_select %p350, %s349, 47
        %s352 = smul.addr %s351, 8
        %s353 = scalar_lea.vmem %s3, %s352
        %s354 = smul.u32 16, %s21
        %s355 = smul.u32 4, %s21
        %s356 = smul.u32 16, %s21
        %p357 = scmp.lt.s32.totalorder %s356, 47
        %s358 = scalar_select %p357, %s356, 47
        %s359 = smul.addr %s358, 8
        %s360 = scalar_lea.vmem %s6, %s359
        %s361 = smul.u32 16, %s21
        %p362 = scmp.eq.s32.totalorder %s22, 0
        // Predicated region
        $region83: #{mixhop_layer.1} parent=77 // pred_check
          %p363 = pneg %p362
        $region84: #{mixhop_layer.1} parent=77 // pred_check_branch
          %365 = sbr.rel (%p363) target = $region86
        $region85: #{mixhop_layer.1} parent=77 // pred_region
          %vm366 = vcmask 261120
          %367 = vst.msk [vmem:[#allocation2] sm:$0xff] %vm366, 0.0
          %368 = vst.msk [vmem:[#allocation2 + $0x8] sm:$0xff] %vm366, 0.0
          %369 = vst.msk [vmem:[#allocation2 + $0x10] sm:$0xff] %vm366, 0.0
          %370 = vst.msk [vmem:[#allocation2 + $0x18] sm:$0xff] %vm366, 0.0
          %371 = vst.msk [vmem:[#allocation2 + $0x20] sm:$0xff] %vm366, 0.0
          %372 = vst.msk [vmem:[#allocation2 + $0x28] sm:$0xff] %vm366, 0.0
          %373 = vst.msk [vmem:[#allocation2 + $0x30] sm:$0xff] %vm366, 0.0
          %374 = vst.msk [vmem:[#allocation2 + $0x38] sm:$0xff] %vm366, 0.0
          %375 = vst.msk [vmem:[#allocation2 + $0x40] sm:$0xff] %vm366, 0.0
          %376 = vst.msk [vmem:[#allocation2 + $0x48] sm:$0xff] %vm366, 0.0
          %377 = vst.msk [vmem:[#allocation2 + $0x50] sm:$0xff] %vm366, 0.0
          %378 = vst.msk [vmem:[#allocation2 + $0x58] sm:$0xff] %vm366, 0.0
          %379 = vst.msk [vmem:[#allocation2 + $0x60] sm:$0xff] %vm366, 0.0
          %380 = vst.msk [vmem:[#allocation2 + $0x68] sm:$0xff] %vm366, 0.0
          %381 = vst.msk [vmem:[#allocation2 + $0x70] sm:$0xff] %vm366, 0.0
          %382 = vst.msk [vmem:[#allocation2 + $0x78] sm:$0xff] %vm366, 0.0
        $region86: #{mixhop_layer.1} parent=77 // pred_fallthru
          _
        %v383 = vld [vmem:[%s306] sm:$0xff]
        %v384 = vld [vmem:[%s306 + $0x8] sm:$0xff]
        %v385 = vld [vmem:[%s306 + $0x10] sm:$0xff]
        %v386 = vld [vmem:[%s306 + $0x18] sm:$0xff]
        %v387 = vunpack.c.0.s8 %v383
        %v388 = vunpack.c.1.s8 %v383
        %v389 = vunpack.c.2.s8 %v383
        %v390 = vunpack.c.3.s8 %v383
        %v391 = vunpack.c.0.s8 %v384
        %v392 = vunpack.c.1.s8 %v384
        %v393 = vunpack.c.2.s8 %v384
        %v394 = vunpack.c.3.s8 %v384
        %v395 = vunpack.c.0.s8 %v385
        %v396 = vunpack.c.1.s8 %v385
        %v397 = vunpack.c.2.s8 %v385
        %v398 = vunpack.c.3.s8 %v385
        %v399 = vunpack.c.0.s8 %v386
        %v400 = vunpack.c.1.s8 %v386
        %v401 = vunpack.c.2.s8 %v386
        %v402 = vunpack.c.3.s8 %v386
        %v403 = vcvt.s32.f32 %v387
        %v404 = vcvt.s32.f32 %v388
        %v405 = vcvt.s32.f32 %v389
        %v406 = vcvt.s32.f32 %v390
        %v407 = vcvt.s32.f32 %v391
        %v408 = vcvt.s32.f32 %v392
        %v409 = vcvt.s32.f32 %v393
        %v410 = vcvt.s32.f32 %v394
        %v411 = vcvt.s32.f32 %v395
        %v412 = vcvt.s32.f32 %v396
        %v413 = vcvt.s32.f32 %v397
        %v414 = vcvt.s32.f32 %v398
        %v415 = vcvt.s32.f32 %v399
        %v416 = vcvt.s32.f32 %v400
        %v417 = vcvt.s32.f32 %v401
        %v418 = vcvt.s32.f32 %v402
        %v419 = vpack.c.bf16 %v404, %v403
        %v420 = vpack.c.bf16 %v406, %v405
        %v421 = vpack.c.bf16 %v408, %v407
        %v422 = vpack.c.bf16 %v410, %v409
        %v423 = vpack.c.bf16 %v412, %v411
        %v424 = vpack.c.bf16 %v414, %v413
        %v425 = vpack.c.bf16 %v416, %v415
        %v426 = vpack.c.bf16 %v418, %v417
        %s427 = smul.u32 %s22, 128
        %s428 = sshra.s32 %s427, 3
        %s429 = sand.u32 %s427, 7
        %s430 = smul.addr %s428, 4
        %s431 = scalar_lea.vmem %s1, %s430
        %v432 = vld [vmem:[%s431] sm:$0xf]
        %v433 = vld [vmem:[%s431 + $0x4] sm:$0xf]
        %v434 = vld [vmem:[%s431 + $0x8] sm:$0xf]
        %v435 = vld [vmem:[%s431 + $0xc] sm:$0xf]
        %v436 = vld [vmem:[%s431 + $0x10] sm:$0xf]
        %v437 = vld [vmem:[%s431 + $0x14] sm:$0xf]
        %v438 = vld [vmem:[%s431 + $0x18] sm:$0xf]
        %v439 = vld [vmem:[%s431 + $0x1c] sm:$0xf]
        %v440 = vld [vmem:[%s431 + $0x20] sm:$0xf]
        %v441 = vld [vmem:[%s431 + $0x24] sm:$0xf]
        %v442 = vld [vmem:[%s431 + $0x28] sm:$0xf]
        %v443 = vld [vmem:[%s431 + $0x2c] sm:$0xf]
        %v444 = vld [vmem:[%s431 + $0x30] sm:$0xf]
        %v445 = vld [vmem:[%s431 + $0x34] sm:$0xf]
        %v446 = vld [vmem:[%s431 + $0x38] sm:$0xf]
        %v447 = vld [vmem:[%s431 + $0x3c] sm:$0xf]
        %s448 = smul.addr %s428, 4
        %s449 = scalar_lea.vmem %s2, %s448
        %v450 = vld [vmem:[%s449] sm:$0xf]
        %v451 = vld [vmem:[%s449 + $0x4] sm:$0xf]
        %v452 = vld [vmem:[%s449 + $0x8] sm:$0xf]
        %v453 = vld [vmem:[%s449 + $0xc] sm:$0xf]
        %v454 = vld [vmem:[%s449 + $0x10] sm:$0xf]
        %v455 = vld [vmem:[%s449 + $0x14] sm:$0xf]
        %v456 = vld [vmem:[%s449 + $0x18] sm:$0xf]
        %v457 = vld [vmem:[%s449 + $0x1c] sm:$0xf]
        %v458 = vld [vmem:[%s449 + $0x20] sm:$0xf]
        %v459 = vld [vmem:[%s449 + $0x24] sm:$0xf]
        %v460 = vld [vmem:[%s449 + $0x28] sm:$0xf]
        %v461 = vld [vmem:[%s449 + $0x2c] sm:$0xf]
        %v462 = vld [vmem:[%s449 + $0x30] sm:$0xf]
        %v463 = vld [vmem:[%s449 + $0x34] sm:$0xf]
        %v464 = vld [vmem:[%s449 + $0x38] sm:$0xf]
        %v465 = vld [vmem:[%s449 + $0x3c] sm:$0xf]
        %v466 = vld [vmem:[#allocation2] sm:$0xff]
        %v467 = vld [vmem:[#allocation2 + $0x8] sm:$0xff]
        %v468 = vld [vmem:[#allocation2 + $0x10] sm:$0xff]
        %v469 = vld [vmem:[#allocation2 + $0x18] sm:$0xff]
        %v470 = vld [vmem:[#allocation2 + $0x20] sm:$0xff]
        %v471 = vld [vmem:[#allocation2 + $0x28] sm:$0xff]
        %v472 = vld [vmem:[#allocation2 + $0x30] sm:$0xff]
        %v473 = vld [vmem:[#allocation2 + $0x38] sm:$0xff]
        %v474 = vld [vmem:[#allocation2 + $0x40] sm:$0xff]
        %v475 = vld [vmem:[#allocation2 + $0x48] sm:$0xff]
        %v476 = vld [vmem:[#allocation2 + $0x50] sm:$0xff]
        %v477 = vld [vmem:[#allocation2 + $0x58] sm:$0xff]
        %v478 = vld [vmem:[#allocation2 + $0x60] sm:$0xff]
        %v479 = vld [vmem:[#allocation2 + $0x68] sm:$0xff]
        %v480 = vld [vmem:[#allocation2 + $0x70] sm:$0xff]
        %v481 = vld [vmem:[#allocation2 + $0x78] sm:$0xff]
        %v498 = vunpack.c.l.b16 %v450
        %v499 = vunpack.c.l.b16 %v451
        %v500 = vunpack.c.l.b16 %v452
        %v501 = vunpack.c.l.b16 %v453
        %v502 = vunpack.c.l.b16 %v454
        %v503 = vunpack.c.l.b16 %v455
        %v504 = vunpack.c.l.b16 %v456
        %v505 = vunpack.c.l.b16 %v457
        %v506 = vunpack.c.l.b16 %v458
        %v507 = vunpack.c.l.b16 %v459
        %v508 = vunpack.c.l.b16 %v460
        %v509 = vunpack.c.l.b16 %v461
        %v510 = vunpack.c.l.b16 %v462
        %v511 = vunpack.c.l.b16 %v463
        %v512 = vunpack.c.l.b16 %v464
        %v513 = vunpack.c.l.b16 %v465
        %v514 = vpack.c.b16 %v499, %v498
        %v515 = vpack.c.b16 %v501, %v500
        %v516 = vpack.c.b16 %v503, %v502
        %v517 = vpack.c.b16 %v505, %v504
        %v518 = vpack.c.b16 %v507, %v506
        %v519 = vpack.c.b16 %v509, %v508
        %v520 = vpack.c.b16 %v511, %v510
        %v521 = vpack.c.b16 %v513, %v512
        %530 = vmatpush.bf16.msra.mxu0 %v521
        %531 = vmatpush.bf16.msra.mxu0 %v520
        %532 = vmatpush.bf16.msra.mxu0 %v519
        %533 = vmatpush.bf16.msra.mxu0 %v518
        %534 = vmatpush.bf16.msra.mxu0 %v517
        %535 = vmatpush.bf16.msra.mxu0 %v516
        %536 = vmatpush.bf16.msra.mxu0 %v515
        %537 = vmatpush.bf16.msra.mxu0 %v514
        %538 = vmatmul.bf16.gmra.mxu0 %v419
        %v539 = vpop.f32.mrf.mxu0
        %v540 = vadd.f32 0.0, %v539
        %v541 = vpop.f32.mrf.mxu0
        %v542 = vadd.f32 0.0, %v541
        %543 = vmatmul.bf16.gmra.mxu0 %v420
        %v544 = vpop.f32.mrf.mxu0
        %v545 = vadd.f32 0.0, %v544
        %v546 = vpop.f32.mrf.mxu0
        %v547 = vadd.f32 0.0, %v546
        %548 = vmatmul.bf16.gmra.mxu0 %v421
        %v549 = vpop.f32.mrf.mxu0
        %v550 = vadd.f32 0.0, %v549
        %v551 = vpop.f32.mrf.mxu0
        %v552 = vadd.f32 0.0, %v551
        %553 = vmatmul.bf16.gmra.mxu0 %v422
        %v554 = vpop.f32.mrf.mxu0
        %v555 = vadd.f32 0.0, %v554
        %v556 = vpop.f32.mrf.mxu0
        %v557 = vadd.f32 0.0, %v556
        %558 = vmatmul.bf16.gmra.mxu0 %v423
        %v559 = vpop.f32.mrf.mxu0
        %v560 = vadd.f32 0.0, %v559
        %v561 = vpop.f32.mrf.mxu0
        %v562 = vadd.f32 0.0, %v561
        %563 = vmatmul.bf16.gmra.mxu0 %v424
        %v564 = vpop.f32.mrf.mxu0
        %v565 = vadd.f32 0.0, %v564
        %v566 = vpop.f32.mrf.mxu0
        %v567 = vadd.f32 0.0, %v566
        %568 = vmatmul.bf16.gmra.mxu0 %v425
        %v569 = vpop.f32.mrf.mxu0
        %v570 = vadd.f32 0.0, %v569
        %v571 = vpop.f32.mrf.mxu0
        %v572 = vadd.f32 0.0, %v571
        %573 = vmatmul.bf16.gmra.mxu0 %v426
        %v574 = vpop.f32.mrf.mxu0
        %v575 = vadd.f32 0.0, %v574
        %v576 = vpop.f32.mrf.mxu0
        %v577 = vadd.f32 0.0, %v576
        %578 = vdwg.mxu0
        %v595 = vunpack.c.l.b16 %v432
        %v596 = vunpack.c.l.b16 %v433
        %v597 = vunpack.c.l.b16 %v434
        %v598 = vunpack.c.l.b16 %v435
        %v599 = vunpack.c.l.b16 %v436
        %v600 = vunpack.c.l.b16 %v437
        %v601 = vunpack.c.l.b16 %v438
        %v602 = vunpack.c.l.b16 %v439
        %v603 = vunpack.c.l.b16 %v440
        %v604 = vunpack.c.l.b16 %v441
        %v605 = vunpack.c.l.b16 %v442
        %v606 = vunpack.c.l.b16 %v443
        %v607 = vunpack.c.l.b16 %v444
        %v608 = vunpack.c.l.b16 %v445
        %v609 = vunpack.c.l.b16 %v446
        %v610 = vunpack.c.l.b16 %v447
        %v611 = vpack.c.b16 %v596, %v595
        %v612 = vpack.c.b16 %v598, %v597
        %v613 = vpack.c.b16 %v600, %v599
        %v614 = vpack.c.b16 %v602, %v601
        %v615 = vpack.c.b16 %v604, %v603
        %v616 = vpack.c.b16 %v606, %v605
        %v617 = vpack.c.b16 %v608, %v607
        %v618 = vpack.c.b16 %v610, %v609
        %627 = vmatpush.bf16.msra.mxu0 %v618
        %628 = vmatpush.bf16.msra.mxu0 %v617
        %629 = vmatpush.bf16.msra.mxu0 %v616
        %630 = vmatpush.bf16.msra.mxu0 %v615
        %631 = vmatpush.bf16.msra.mxu0 %v614
        %632 = vmatpush.bf16.msra.mxu0 %v613
        %633 = vmatpush.bf16.msra.mxu0 %v612
        %634 = vmatpush.bf16.msra.mxu0 %v611
        %635 = vmatmul.bf16.gmra.mxu0 %v419
        %v636 = vpop.f32.mrf.mxu0
        %v637 = vadd.f32 %v540, %v636
        %v638 = vpop.f32.mrf.mxu0
        %v639 = vadd.f32 %v542, %v638
        %640 = vmatmul.bf16.gmra.mxu0 %v420
        %v641 = vpop.f32.mrf.mxu0
        %v642 = vadd.f32 %v545, %v641
        %v643 = vpop.f32.mrf.mxu0
        %v644 = vadd.f32 %v547, %v643
        %645 = vmatmul.bf16.gmra.mxu0 %v421
        %v646 = vpop.f32.mrf.mxu0
        %v647 = vadd.f32 %v550, %v646
        %v648 = vpop.f32.mrf.mxu0
        %v649 = vadd.f32 %v552, %v648
        %650 = vmatmul.bf16.gmra.mxu0 %v422
        %v651 = vpop.f32.mrf.mxu0
        %v652 = vadd.f32 %v555, %v651
        %v653 = vpop.f32.mrf.mxu0
        %v654 = vadd.f32 %v557, %v653
        %655 = vmatmul.bf16.gmra.mxu0 %v423
        %v656 = vpop.f32.mrf.mxu0
        %v657 = vadd.f32 %v560, %v656
        %v658 = vpop.f32.mrf.mxu0
        %v659 = vadd.f32 %v562, %v658
        %660 = vmatmul.bf16.gmra.mxu0 %v424
        %v661 = vpop.f32.mrf.mxu0
        %v662 = vadd.f32 %v565, %v661
        %v663 = vpop.f32.mrf.mxu0
        %v664 = vadd.f32 %v567, %v663
        %665 = vmatmul.bf16.gmra.mxu0 %v425
        %v666 = vpop.f32.mrf.mxu0
        %v667 = vadd.f32 %v570, %v666
        %v668 = vpop.f32.mrf.mxu0
        %v669 = vadd.f32 %v572, %v668
        %670 = vmatmul.bf16.gmra.mxu0 %v426
        %v671 = vpop.f32.mrf.mxu0
        %v672 = vadd.f32 %v575, %v671
        %v673 = vpop.f32.mrf.mxu0
        %v674 = vadd.f32 %v577, %v673
        %675 = vdwg.mxu0
        %v676 = vadd.f32 %v466, %v637
        %v677 = vadd.f32 %v467, %v639
        %v678 = vadd.f32 %v468, %v642
        %v679 = vadd.f32 %v469, %v644
        %v680 = vadd.f32 %v470, %v647
        %v681 = vadd.f32 %v471, %v649
        %v682 = vadd.f32 %v472, %v652
        %v683 = vadd.f32 %v473, %v654
        %v684 = vadd.f32 %v474, %v657
        %v685 = vadd.f32 %v475, %v659
        %v686 = vadd.f32 %v476, %v662
        %v687 = vadd.f32 %v477, %v664
        %v688 = vadd.f32 %v478, %v667
        %v689 = vadd.f32 %v479, %v669
        %v690 = vadd.f32 %v480, %v672
        %v691 = vadd.f32 %v481, %v674
        %vm692 = vcmask 261120
        %693 = vst.msk [vmem:[#allocation2] sm:$0xff] %vm692, %v676
        %694 = vst.msk [vmem:[#allocation2 + $0x8] sm:$0xff] %vm692, %v677
        %695 = vst.msk [vmem:[#allocation2 + $0x10] sm:$0xff] %vm692, %v678
        %696 = vst.msk [vmem:[#allocation2 + $0x18] sm:$0xff] %vm692, %v679
        %697 = vst.msk [vmem:[#allocation2 + $0x20] sm:$0xff] %vm692, %v680
        %698 = vst.msk [vmem:[#allocation2 + $0x28] sm:$0xff] %vm692, %v681
        %699 = vst.msk [vmem:[#allocation2 + $0x30] sm:$0xff] %vm692, %v682
        %700 = vst.msk [vmem:[#allocation2 + $0x38] sm:$0xff] %vm692, %v683
        %701 = vst.msk [vmem:[#allocation2 + $0x40] sm:$0xff] %vm692, %v684
        %702 = vst.msk [vmem:[#allocation2 + $0x48] sm:$0xff] %vm692, %v685
        %703 = vst.msk [vmem:[#allocation2 + $0x50] sm:$0xff] %vm692, %v686
        %704 = vst.msk [vmem:[#allocation2 + $0x58] sm:$0xff] %vm692, %v687
        %705 = vst.msk [vmem:[#allocation2 + $0x60] sm:$0xff] %vm692, %v688
        %706 = vst.msk [vmem:[#allocation2 + $0x68] sm:$0xff] %vm692, %v689
        %707 = vst.msk [vmem:[#allocation2 + $0x70] sm:$0xff] %vm692, %v690
        %708 = vst.msk [vmem:[#allocation2 + $0x78] sm:$0xff] %vm692, %v691
        %p709 = scmp.eq.s32.totalorder %s22, 2
        // Predicated region
        $region87: #{mixhop_layer.1} parent=77 // pred_check
          %p710 = pneg %p709
        $region88: #{mixhop_layer.1} parent=77 // pred_check_branch
          %712 = sbr.rel (%p710) target = $region90
        $region89: #{mixhop_layer.1} parent=77 // pred_region
          %v713 = vld [vmem:[%s353] sm:$0xff]
          %v714 = vld [vmem:[%s353 + $0x8] sm:$0xff]
          %v715 = vld [vmem:[%s353 + $0x10] sm:$0xff]
          %v716 = vld [vmem:[%s353 + $0x18] sm:$0xff]
          %v717 = vld [vmem:[%s353 + $0x20] sm:$0xff]
          %v718 = vld [vmem:[%s353 + $0x28] sm:$0xff]
          %v719 = vld [vmem:[%s353 + $0x30] sm:$0xff]
          %v720 = vld [vmem:[%s353 + $0x38] sm:$0xff]
          %v721 = vld [vmem:[%s353 + $0x40] sm:$0xff]
          %v722 = vld [vmem:[%s353 + $0x48] sm:$0xff]
          %v723 = vld [vmem:[%s353 + $0x50] sm:$0xff]
          %v724 = vld [vmem:[%s353 + $0x58] sm:$0xff]
          %v725 = vld [vmem:[%s353 + $0x60] sm:$0xff]
          %v726 = vld [vmem:[%s353 + $0x68] sm:$0xff]
          %v727 = vld [vmem:[%s353 + $0x70] sm:$0xff]
          %v728 = vld [vmem:[%s353 + $0x78] sm:$0xff]
          %v729 = vld [vmem:[#allocation2] sm:$0xff]
          %v730 = vld [vmem:[#allocation2 + $0x8] sm:$0xff]
          %v731 = vld [vmem:[#allocation2 + $0x10] sm:$0xff]
          %v732 = vld [vmem:[#allocation2 + $0x18] sm:$0xff]
          %v733 = vld [vmem:[#allocation2 + $0x20] sm:$0xff]
          %v734 = vld [vmem:[#allocation2 + $0x28] sm:$0xff]
          %v735 = vld [vmem:[#allocation2 + $0x30] sm:$0xff]
          %v736 = vld [vmem:[#allocation2 + $0x38] sm:$0xff]
          %v737 = vld [vmem:[#allocation2 + $0x40] sm:$0xff]
          %v738 = vld [vmem:[#allocation2 + $0x48] sm:$0xff]
          %v739 = vld [vmem:[#allocation2 + $0x50] sm:$0xff]
          %v740 = vld [vmem:[#allocation2 + $0x58] sm:$0xff]
          %v741 = vld [vmem:[#allocation2 + $0x60] sm:$0xff]
          %v742 = vld [vmem:[#allocation2 + $0x68] sm:$0xff]
          %v743 = vld [vmem:[#allocation2 + $0x70] sm:$0xff]
          %v744 = vld [vmem:[#allocation2 + $0x78] sm:$0xff]
          %746 = vset.pattern.permute.xlu0 0
          %747 = vperm.xlu0 %746, %v713
          %v748 = vpop.permute.xlu0 %747
          %751 = vset.pattern.permute.xlu0 0
          %752 = vperm.xlu0 %751, %v714
          %v753 = vpop.permute.xlu0 %752
          %756 = vset.pattern.permute.xlu0 0
          %757 = vperm.xlu0 %756, %v715
          %v758 = vpop.permute.xlu0 %757
          %761 = vset.pattern.permute.xlu0 0
          %762 = vperm.xlu0 %761, %v716
          %v763 = vpop.permute.xlu0 %762
          %766 = vset.pattern.permute.xlu0 0
          %767 = vperm.xlu0 %766, %v717
          %v768 = vpop.permute.xlu0 %767
          %771 = vset.pattern.permute.xlu0 0
          %772 = vperm.xlu0 %771, %v718
          %v773 = vpop.permute.xlu0 %772
          %776 = vset.pattern.permute.xlu0 0
          %777 = vperm.xlu0 %776, %v719
          %v778 = vpop.permute.xlu0 %777
          %781 = vset.pattern.permute.xlu0 0
          %782 = vperm.xlu0 %781, %v720
          %v783 = vpop.permute.xlu0 %782
          %786 = vset.pattern.permute.xlu0 0
          %787 = vperm.xlu0 %786, %v721
          %v788 = vpop.permute.xlu0 %787
          %791 = vset.pattern.permute.xlu0 0
          %792 = vperm.xlu0 %791, %v722
          %v793 = vpop.permute.xlu0 %792
          %796 = vset.pattern.permute.xlu0 0
          %797 = vperm.xlu0 %796, %v723
          %v798 = vpop.permute.xlu0 %797
          %801 = vset.pattern.permute.xlu0 0
          %802 = vperm.xlu0 %801, %v724
          %v803 = vpop.permute.xlu0 %802
          %806 = vset.pattern.permute.xlu0 0
          %807 = vperm.xlu0 %806, %v725
          %v808 = vpop.permute.xlu0 %807
          %811 = vset.pattern.permute.xlu0 0
          %812 = vperm.xlu0 %811, %v726
          %v813 = vpop.permute.xlu0 %812
          %816 = vset.pattern.permute.xlu0 0
          %817 = vperm.xlu0 %816, %v727
          %v818 = vpop.permute.xlu0 %817
          %821 = vset.pattern.permute.xlu0 0
          %822 = vperm.xlu0 %821, %v728
          %v823 = vpop.permute.xlu0 %822
          %v825 = vmul.f32 %v748, %v729
          %v826 = vmul.f32 %v753, %v730
          %v827 = vmul.f32 %v758, %v731
          %v828 = vmul.f32 %v763, %v732
          %v829 = vmul.f32 %v768, %v733
          %v830 = vmul.f32 %v773, %v734
          %v831 = vmul.f32 %v778, %v735
          %v832 = vmul.f32 %v783, %v736
          %v833 = vmul.f32 %v788, %v737
          %v834 = vmul.f32 %v793, %v738
          %v835 = vmul.f32 %v798, %v739
          %v836 = vmul.f32 %v803, %v740
          %v837 = vmul.f32 %v808, %v741
          %v838 = vmul.f32 %v813, %v742
          %v839 = vmul.f32 %v818, %v743
          %v840 = vmul.f32 %v823, %v744
          %s841 = scalar_lea.vmem %s5, 32
          %v842 = vld [vmem:[%s841] sm:$0xff]
          %v843 = vld [vmem:[%s841 + $0x8] sm:$0xff]
          %v844 = vld [vmem:[%s841 + $0x10] sm:$0xff]
          %v845 = vld [vmem:[%s841 + $0x18] sm:$0xff]
          %v846 = vld [vmem:[%s347] sm:$0xff]
          %v847 = vld [vmem:[%s347 + $0x8] sm:$0xff]
          %v848 = vld [vmem:[%s347 + $0x10] sm:$0xff]
          %v849 = vld [vmem:[%s347 + $0x18] sm:$0xff]
          %v850 = vld [vmem:[%s347 + $0x20] sm:$0xff]
          %v851 = vld [vmem:[%s347 + $0x28] sm:$0xff]
          %v852 = vld [vmem:[%s347 + $0x30] sm:$0xff]
          %v853 = vld [vmem:[%s347 + $0x38] sm:$0xff]
          %v854 = vld [vmem:[%s347 + $0x40] sm:$0xff]
          %v855 = vld [vmem:[%s347 + $0x48] sm:$0xff]
          %v856 = vld [vmem:[%s347 + $0x50] sm:$0xff]
          %v857 = vld [vmem:[%s347 + $0x58] sm:$0xff]
          %v858 = vld [vmem:[%s347 + $0x60] sm:$0xff]
          %v859 = vld [vmem:[%s347 + $0x68] sm:$0xff]
          %v860 = vld [vmem:[%s347 + $0x70] sm:$0xff]
          %v861 = vld [vmem:[%s347 + $0x78] sm:$0xff]
          %v862 = vld [vmem:[%s5] sm:$0xff]
          %v863 = vld [vmem:[%s5 + $0x8] sm:$0xff]
          %v864 = vld [vmem:[%s5 + $0x10] sm:$0xff]
          %v865 = vld [vmem:[%s5 + $0x18] sm:$0xff]
          %v867 = vsel %vm692, %v846, 0
          %v870 = vsel %vm692, %v847, 0
          %v873 = vsel %vm692, %v848, 0
          %v876 = vsel %vm692, %v849, 0
          %v879 = vsel %vm692, %v850, 0
          %v882 = vsel %vm692, %v851, 0
          %v885 = vsel %vm692, %v852, 0
          %v888 = vsel %vm692, %v853, 0
          %v891 = vsel %vm692, %v854, 0
          %v894 = vsel %vm692, %v855, 0
          %v897 = vsel %vm692, %v856, 0
          %v900 = vsel %vm692, %v857, 0
          %v903 = vsel %vm692, %v858, 0
          %v906 = vsel %vm692, %v859, 0
          %v909 = vsel %vm692, %v860, 0
          %v912 = vsel %vm692, %v861, 0
          %914 = vmatpush.msra.mxu0 0.0
          %915 = vmatpush.msra.mxu0 0.0
          %916 = vmatpush.msra.mxu0 0.0
          %917 = vmatpush.msra.mxu0 0.0
          %918 = vmatpush.msra.mxu0 0.0
          %919 = vmatpush.msra.mxu0 0.0
          %920 = vmatpush.msra.mxu0 0.0
          %921 = vmatpush.msra.mxu0 0.0
          %922 = vmatpush.msra.mxu0 0.0
          %923 = vmatpush.msra.mxu0 0.0
          %924 = vmatpush.msra.mxu0 0.0
          %925 = vmatpush.msra.mxu0 0.0
          %926 = vmatpush.msra.mxu0 %v865
          %927 = vmatpush.msra.mxu0 %v864
          %928 = vmatpush.msra.mxu0 %v863
          %929 = vmatpush.msra.mxu0 %v862
          %930 = vmatmul.f32.gmra.mxu0 %v867
          %v931 = vpop.f32.mrf.mxu0
          %v932 = vadd.f32 0.0, %v931
          %933 = vmatmul.f32.gmra.mxu0 %v870
          %v934 = vpop.f32.mrf.mxu0
          %v935 = vadd.f32 0.0, %v934
          %936 = vmatmul.f32.gmra.mxu0 %v873
          %v937 = vpop.f32.mrf.mxu0
          %v938 = vadd.f32 0.0, %v937
          %939 = vmatmul.f32.gmra.mxu0 %v876
          %v940 = vpop.f32.mrf.mxu0
          %v941 = vadd.f32 0.0, %v940
          %942 = vmatmul.f32.gmra.mxu0 %v879
          %v943 = vpop.f32.mrf.mxu0
          %v944 = vadd.f32 0.0, %v943
          %945 = vmatmul.f32.gmra.mxu0 %v882
          %v946 = vpop.f32.mrf.mxu0
          %v947 = vadd.f32 0.0, %v946
          %948 = vmatmul.f32.gmra.mxu0 %v885
          %v949 = vpop.f32.mrf.mxu0
          %v950 = vadd.f32 0.0, %v949
          %951 = vmatmul.f32.gmra.mxu0 %v888
          %v952 = vpop.f32.mrf.mxu0
          %v953 = vadd.f32 0.0, %v952
          %954 = vmatmul.f32.gmra.mxu0 %v891
          %v955 = vpop.f32.mrf.mxu0
          %v956 = vadd.f32 0.0, %v955
          %957 = vmatmul.f32.gmra.mxu0 %v894
          %v958 = vpop.f32.mrf.mxu0
          %v959 = vadd.f32 0.0, %v958
          %960 = vmatmul.f32.gmra.mxu0 %v897
          %v961 = vpop.f32.mrf.mxu0
          %v962 = vadd.f32 0.0, %v961
          %963 = vmatmul.f32.gmra.mxu0 %v900
          %v964 = vpop.f32.mrf.mxu0
          %v965 = vadd.f32 0.0, %v964
          %966 = vmatmul.f32.gmra.mxu0 %v903
          %v967 = vpop.f32.mrf.mxu0
          %v968 = vadd.f32 0.0, %v967
          %969 = vmatmul.f32.gmra.mxu0 %v906
          %v970 = vpop.f32.mrf.mxu0
          %v971 = vadd.f32 0.0, %v970
          %972 = vmatmul.f32.gmra.mxu0 %v909
          %v973 = vpop.f32.mrf.mxu0
          %v974 = vadd.f32 0.0, %v973
          %975 = vmatmul.f32.gmra.mxu0 %v912
          %v976 = vpop.f32.mrf.mxu0
          %v977 = vadd.f32 0.0, %v976
          %978 = vdwg.mxu0
          %v980 = vsel %vm692, %v825, 0
          %v983 = vsel %vm692, %v826, 0
          %v986 = vsel %vm692, %v827, 0
          %v989 = vsel %vm692, %v828, 0
          %v992 = vsel %vm692, %v829, 0
          %v995 = vsel %vm692, %v830, 0
          %v998 = vsel %vm692, %v831, 0
          %v1001 = vsel %vm692, %v832, 0
          %v1004 = vsel %vm692, %v833, 0
          %v1007 = vsel %vm692, %v834, 0
          %v1010 = vsel %vm692, %v835, 0
          %v1013 = vsel %vm692, %v836, 0
          %v1016 = vsel %vm692, %v837, 0
          %v1019 = vsel %vm692, %v838, 0
          %v1022 = vsel %vm692, %v839, 0
          %v1025 = vsel %vm692, %v840, 0
          %1027 = vmatpush.msra.mxu0 0.0
          %1028 = vmatpush.msra.mxu0 0.0
          %1029 = vmatpush.msra.mxu0 0.0
          %1030 = vmatpush.msra.mxu0 0.0
          %1031 = vmatpush.msra.mxu0 0.0
          %1032 = vmatpush.msra.mxu0 0.0
          %1033 = vmatpush.msra.mxu0 0.0
          %1034 = vmatpush.msra.mxu0 0.0
          %1035 = vmatpush.msra.mxu0 0.0
          %1036 = vmatpush.msra.mxu0 0.0
          %1037 = vmatpush.msra.mxu0 0.0
          %1038 = vmatpush.msra.mxu0 0.0
          %1039 = vmatpush.msra.mxu0 %v845
          %1040 = vmatpush.msra.mxu0 %v844
          %1041 = vmatpush.msra.mxu0 %v843
          %1042 = vmatpush.msra.mxu0 %v842
          %1043 = vmatmul.f32.gmra.mxu0 %v980
          %v1044 = vpop.f32.mrf.mxu0
          %v1045 = vadd.f32 %v932, %v1044
          %1046 = vmatmul.f32.gmra.mxu0 %v983
          %v1047 = vpop.f32.mrf.mxu0
          %v1048 = vadd.f32 %v935, %v1047
          %1049 = vmatmul.f32.gmra.mxu0 %v986
          %v1050 = vpop.f32.mrf.mxu0
          %v1051 = vadd.f32 %v938, %v1050
          %1052 = vmatmul.f32.gmra.mxu0 %v989
          %v1053 = vpop.f32.mrf.mxu0
          %v1054 = vadd.f32 %v941, %v1053
          %1055 = vmatmul.f32.gmra.mxu0 %v992
          %v1056 = vpop.f32.mrf.mxu0
          %v1057 = vadd.f32 %v944, %v1056
          %1058 = vmatmul.f32.gmra.mxu0 %v995
          %v1059 = vpop.f32.mrf.mxu0
          %v1060 = vadd.f32 %v947, %v1059
          %1061 = vmatmul.f32.gmra.mxu0 %v998
          %v1062 = vpop.f32.mrf.mxu0
          %v1063 = vadd.f32 %v950, %v1062
          %1064 = vmatmul.f32.gmra.mxu0 %v1001
          %v1065 = vpop.f32.mrf.mxu0
          %v1066 = vadd.f32 %v953, %v1065
          %1067 = vmatmul.f32.gmra.mxu0 %v1004
          %v1068 = vpop.f32.mrf.mxu0
          %v1069 = vadd.f32 %v956, %v1068
          %1070 = vmatmul.f32.gmra.mxu0 %v1007
          %v1071 = vpop.f32.mrf.mxu0
          %v1072 = vadd.f32 %v959, %v1071
          %1073 = vmatmul.f32.gmra.mxu0 %v1010
          %v1074 = vpop.f32.mrf.mxu0
          %v1075 = vadd.f32 %v962, %v1074
          %1076 = vmatmul.f32.gmra.mxu0 %v1013
          %v1077 = vpop.f32.mrf.mxu0
          %v1078 = vadd.f32 %v965, %v1077
          %1079 = vmatmul.f32.gmra.mxu0 %v1016
          %v1080 = vpop.f32.mrf.mxu0
          %v1081 = vadd.f32 %v968, %v1080
          %1082 = vmatmul.f32.gmra.mxu0 %v1019
          %v1083 = vpop.f32.mrf.mxu0
          %v1084 = vadd.f32 %v971, %v1083
          %1085 = vmatmul.f32.gmra.mxu0 %v1022
          %v1086 = vpop.f32.mrf.mxu0
          %v1087 = vadd.f32 %v974, %v1086
          %1088 = vmatmul.f32.gmra.mxu0 %v1025
          %v1089 = vpop.f32.mrf.mxu0
          %v1090 = vadd.f32 %v977, %v1089
          %1091 = vdwg.mxu0
          %vm1092 = vcmask 523264
          %1093 = vst.msk [vmem:[%s360] sm:$0xff] %vm1092, %v1045
          %1094 = vst.msk [vmem:[%s360 + $0x8] sm:$0xff] %vm1092, %v1048
          %1095 = vst.msk [vmem:[%s360 + $0x10] sm:$0xff] %vm1092, %v1051
          %1096 = vst.msk [vmem:[%s360 + $0x18] sm:$0xff] %vm1092, %v1054
          %1097 = vst.msk [vmem:[%s360 + $0x20] sm:$0xff] %vm1092, %v1057
          %1098 = vst.msk [vmem:[%s360 + $0x28] sm:$0xff] %vm1092, %v1060
          %1099 = vst.msk [vmem:[%s360 + $0x30] sm:$0xff] %vm1092, %v1063
          %1100 = vst.msk [vmem:[%s360 + $0x38] sm:$0xff] %vm1092, %v1066
          %1101 = vst.msk [vmem:[%s360 + $0x40] sm:$0xff] %vm1092, %v1069
          %1102 = vst.msk [vmem:[%s360 + $0x48] sm:$0xff] %vm1092, %v1072
          %1103 = vst.msk [vmem:[%s360 + $0x50] sm:$0xff] %vm1092, %v1075
          %1104 = vst.msk [vmem:[%s360 + $0x58] sm:$0xff] %vm1092, %v1078
          %1105 = vst.msk [vmem:[%s360 + $0x60] sm:$0xff] %vm1092, %v1081
          %1106 = vst.msk [vmem:[%s360 + $0x68] sm:$0xff] %vm1092, %v1084
          %1107 = vst.msk [vmem:[%s360 + $0x70] sm:$0xff] %vm1092, %v1087
          %1108 = vst.msk [vmem:[%s360 + $0x78] sm:$0xff] %vm1092, %v1090
        $region90: #{mixhop_layer.1} parent=77 // pred_fallthru
          _
        %s1109 = smul.u32 16, %s21
        %p1110 = scmp.lt.s32.totalorder %s1109, 47
        %s1111 = scalar_select %p1110, %s1109, 47
        %s1112 = smul.addr %s1111, 8
        %s1113 = scalar_lea.vmem %s6, %s1112
        // Predicated region
        $region91: #{mixhop_layer.1} parent=77 // pred_check
          %p1114 = pneg %p190
        $region92: #{mixhop_layer.1} parent=77 // pred_check_branch
          %1116 = sbr.rel (%p1114) target = $region94
        $region93: #{mixhop_layer.1} parent=77 // pred_region
          %s1117 = smul.u32 16, %s21
        $region94: #{mixhop_layer.1} parent=77 // pred_fallthru
          _
      $region78: #{mixhop_layer.1} parent=5 // pred_fallthru
        _
      %p1118 = scmp.le.s32.totalorder 2, %s12
      // Predicated region
      $region95: #{mixhop_layer.1} parent=5 // pred_check
        %p1119 = pneg %p1118
      $region96: #{mixhop_layer.1} parent=5 // pred_check_branch
        %1121 = sbr.rel (%p1119) target = $region98
      $region97: #{mixhop_layer.1} parent=5 // pred_region
        %s1122 = ssub.s32 %s12, 2
        // Predicated region
        $region99: #{mixhop_layer.1} parent=97 // pred_check
          %p1123 = pneg %p196
        $region100: #{mixhop_layer.1} parent=97 // pred_check_branch
          %1125 = sbr.rel (%p1123) target = $region102
        $region101: #{mixhop_layer.1} parent=97 // pred_region
          %s1126 = smul.u32 16, %s23
          %p1127 = scmp.lt.s32.totalorder %s1126, 47
          %s1128 = scalar_select %p1127, %s1126, 47
          %s1129 = smul.addr %s1128, 8
          %s1130 = scalar_lea.vmem %s6, %s1129
        $region102: #{mixhop_layer.1} parent=97 // pred_fallthru
          _
      $region98: #{mixhop_layer.1} parent=5 // pred_fallthru
        _
    $region6: #{mixhop_layer.1} parent=1 // loop_footer
      %s16 = sadd.s32 1, %s12
    $region7: #{mixhop_layer.1} parent=1 // loop_footer_branch
      %11 = sbr.rel target = $region3
    $region8: #{mixhop_layer.1} parent=1 // loop_exit
      _

</llo_original>
